<compile_context>
chip_gen: v5e
topology: v5e:2x2
jax: 0.10.0
libtpu: 0.0.40
codegen_flags: <defaults>
</compile_context>

<pallas_src>
import jax
import jax.numpy as jnp
from jax.experimental import pallas as pl
from jax.experimental.pallas import tpu as pltpu


def _wce_kernel(logits_ref, tgt_ref, w_ref, loss_ref):
    # logits_ref, tgt_ref : (C, TB) VMEM ; w_ref : (C, 1) VMEM ; loss_ref : (1, TB) VMEM
    logits = logits_ref[...]
    tgt = tgt_ref[...]
    w = w_ref[...]                                          # (C, 1) broadcasts over lanes

    # numerically-stable logsumexp over the class (sublane) axis
    m = jnp.max(logits, axis=0, keepdims=True)              # (1, TB)
    lse = jnp.log(jnp.sum(jnp.exp(logits - m), axis=0, keepdims=True)) + m

    # loss_i = lse_i - sum_c t*logits   (targets are probabilities summing to 1)
    tdot = jnp.sum(tgt * logits, axis=0, keepdims=True)     # (1, TB)
    wsum = jnp.sum(tgt * w, axis=0, keepdims=True)          # (1, TB); 0 on padded rows
    loss_ref[...] = (lse - tdot) * wsum


def _choose_tile_b(batch, n_classes):
    """Lane-axis tile size (batch elements per block); multiple of 128."""
    b128 = ((batch + 127) // 128) * 128
    # f32 VMEM tiling pads the sublane (class) axis up to a multiple of 8.
    c_pad = ((max(n_classes, 1) + 7) // 8) * 8
    # keep one (C, TILE_B) tile near <= 2 MiB: 2 inputs x 2 pipeline buffers then
    # stay well under the scoped-VMEM defaults (16 MiB v5e / 32 MiB v6e / v7x).
    cap = max(128, ((2 * 1024 * 1024) // (c_pad * 4)) // 128 * 128)
    return int(min(b128, cap, 8192))


def weighted_cross_entropy_loss(outputs, targets, class_weights, tile_b=None):
    """outputs: reshapeable to targets.shape; targets: (B, C) class probabilities
    (one-hot in practice); class_weights: (C,). Returns scalar float32 loss."""
    targets = targets.astype(jnp.float32)
    outputs = outputs.reshape(targets.shape).astype(jnp.float32)
    B, C = targets.shape

    if tile_b is None:
        tile_b = _choose_tile_b(B, C)
    else:
        tile_b = max(128, (int(tile_b) // 128) * 128)
    B_pad = ((B + tile_b - 1) // tile_b) * tile_b
    num_blocks = B_pad // tile_b

    if B_pad != B:
        pad = ((0, B_pad - B), (0, 0))
        outputs = jnp.pad(outputs, pad)
        targets = jnp.pad(targets, pad)   # zero targets -> zero weight -> no contribution

    # lane-dense layout: classes on sublanes, batch on lanes
    logits_t = outputs.T                  # (C, B_pad)
    targets_t = targets.T                 # (C, B_pad)
    w = class_weights.reshape(C, 1).astype(jnp.float32)

    # TODO(synk): if targets are guaranteed one-hot, pass integer labels via scalar
    # prefetch and gather logit/weight per row (halves HBM traffic); for vocab-scale C,
    # tile the class axis with an online logsumexp instead of a single (C, TILE_B) tile.
    row_loss = pl.pallas_call(
        _wce_kernel,
        out_shape=jax.ShapeDtypeStruct((1, B_pad), jnp.float32),
        grid=(num_blocks,),
        in_specs=[
            pl.BlockSpec((C, tile_b), lambda i: (0, i)),   # logits (transposed)
            pl.BlockSpec((C, tile_b), lambda i: (0, i)),   # targets (transposed)
            pl.BlockSpec((C, 1), lambda i: (0, 0)),        # class weights (resident)
        ],
        out_specs=pl.BlockSpec((1, tile_b), lambda i: (0, i)),
        compiler_params=pltpu.CompilerParams(
            dimension_semantics=("parallel",)),
    )(logits_t, targets_t, w)

    # normalize by the TRUE batch size (matches module: mean over batch count)
    return jnp.sum(row_loss) / B


def _reference(outputs, targets, class_weights):
    # pure-JAX reference mirroring torch cross_entropy with probability targets
    logp = jax.nn.log_softmax(outputs.astype(jnp.float32), axis=-1)
    loss = -jnp.sum(targets * logp, axis=-1)
    w = jnp.sum(targets * class_weights[None, :], axis=-1)
    return jnp.mean(loss * w)


if __name__ == "__main__":
    key = jax.random.PRNGKey(0)

    # Case 1: the module's literal default (n_classes=2, uniform weights)
    B, C = 8, 2
    k_logits, k_labels = jax.random.split(key)
    raw = jax.random.normal(k_logits, (B, C), dtype=jnp.float32)
    outputs = jax.nn.softmax(raw, axis=-1)            # docstring: rows sum to 1
    labels = jax.random.randint(k_labels, (B,), 0, C)
    targets = jax.nn.one_hot(labels, C, dtype=jnp.float32)
    class_weights = jnp.ones((C,), dtype=jnp.float32)  # __init__: [1] * n_classes

    loss = jax.block_until_ready(
        weighted_cross_entropy_loss(outputs, targets, class_weights))
    ref = _reference(outputs, targets, class_weights)
    assert jnp.allclose(loss, ref, atol=1e-5, rtol=1e-5), (loss, ref)

    # Case 2: non-128-multiple batch, >1 grid block, non-uniform class weights
    B2, C2 = 300, 5
    k1, k2, k3 = jax.random.split(jax.random.PRNGKey(1), 3)
    out2 = jax.random.normal(k1, (B2, C2), dtype=jnp.float32)
    tgt2 = jax.nn.one_hot(jax.random.randint(k2, (B2,), 0, C2), C2, dtype=jnp.float32)
    w2 = jax.random.uniform(k3, (C2,), minval=0.5, maxval=2.0, dtype=jnp.float32)
    loss2 = jax.block_until_ready(
        weighted_cross_entropy_loss(out2, tgt2, w2, tile_b=128))  # 3 grid blocks + padding
    ref2 = _reference(out2, tgt2, w2)
    assert jnp.allclose(loss2, ref2, atol=1e-5, rtol=1e-5), (loss2, ref2)

    print("KERNEL_OK")
</pallas_src>

<mosaic_0001>
module attributes {stable_mosaic.version = 11 : i64} {
  func.func @_wce_kernel(%arg0: i32, %arg1: memref<2x128xf32, #tpu.memory_space<vmem>>, %arg2: memref<2x128xf32, #tpu.memory_space<vmem>>, %arg3: memref<2x1xf32, #tpu.memory_space<vmem>>, %arg4: memref<1x128xf32, #tpu.memory_space<vmem>>) attributes {dimension_semantics = [#tpu.dimension_semantics<parallel>], iteration_bounds = array<i64: 1>, scalar_prefetch = 0 : i64, scratch_operands = 0 : i64, tpu.core_type = #tpu.core_type<tc>, window_params = [{transform_indices = @transform_0, window_bounds = array<i64: 2, 128>}, {transform_indices = @transform_1, window_bounds = array<i64: 2, 128>}, {pipeline_mode = #tpu.pipeline_mode<synchronous>, transform_indices = @transform_2, window_bounds = array<i64: 2, 1>}, {transform_indices = @transform_3, window_bounds = array<i64: 1, 128>}]} {
    %c0 = arith.constant 0 : index
    %c0_0 = arith.constant 0 : index
    %0 = vector.load %arg1[%c0, %c0_0] : memref<2x128xf32, #tpu.memory_space<vmem>>, vector<2x128xf32>
    %c0_1 = arith.constant 0 : index
    %c0_2 = arith.constant 0 : index
    %1 = vector.load %arg2[%c0_1, %c0_2] : memref<2x128xf32, #tpu.memory_space<vmem>>, vector<2x128xf32>
    %c0_3 = arith.constant 0 : index
    %c0_4 = arith.constant 0 : index
    %2 = vector.load %arg3[%c0_3, %c0_4] : memref<2x1xf32, #tpu.memory_space<vmem>>, vector<2x1xf32>
    %cst = arith.constant dense<0xFF800000> : vector<128xf32>
    %3 = vector.multi_reduction <maximumf>, %0, %cst [0] : vector<2x128xf32> to vector<128xf32>
    %4 = vector.shape_cast %3 : vector<128xf32> to vector<1x128xf32>
    %5 = vector.broadcast %4 : vector<1x128xf32> to vector<2x128xf32>
    %6 = arith.subf %0, %5 : vector<2x128xf32>
    %7 = math.exp %6 : vector<2x128xf32>
    %cst_5 = arith.constant dense<0.000000e+00> : vector<128xf32>
    %8 = vector.multi_reduction <add>, %7, %cst_5 [0] : vector<2x128xf32> to vector<128xf32>
    %9 = vector.shape_cast %8 : vector<128xf32> to vector<1x128xf32>
    %10 = math.log %9 : vector<1x128xf32>
    %11 = arith.addf %10, %4 : vector<1x128xf32>
    %12 = arith.mulf %1, %0 : vector<2x128xf32>
    %cst_6 = arith.constant dense<0.000000e+00> : vector<128xf32>
    %13 = vector.multi_reduction <add>, %12, %cst_6 [0] : vector<2x128xf32> to vector<128xf32>
    %14 = vector.shape_cast %13 : vector<128xf32> to vector<1x128xf32>
    %15 = vector.broadcast %2 : vector<2x1xf32> to vector<2x128xf32>
    %16 = arith.mulf %1, %15 : vector<2x128xf32>
    %cst_7 = arith.constant dense<0.000000e+00> : vector<128xf32>
    %17 = vector.multi_reduction <add>, %16, %cst_7 [0] : vector<2x128xf32> to vector<128xf32>
    %18 = vector.shape_cast %17 : vector<128xf32> to vector<1x128xf32>
    %19 = arith.subf %11, %14 : vector<1x128xf32>
    %20 = arith.mulf %19, %18 : vector<1x128xf32>
    %c0_8 = arith.constant 0 : index
    %c0_9 = arith.constant 0 : index
    %21 = vector.load %arg4[%c0_8, %c0_9] : memref<1x128xf32, #tpu.memory_space<vmem>>, vector<1x128xf32>
    tpu.vector_store %arg4[%c0_8, %c0_9], %20 {strides = array<i32>} : memref<1x128xf32, #tpu.memory_space<vmem>>, vector<1x128xf32>,
    return
  }
  func.func @transform_0(%arg0: i32) -> (i32, i32) {
    %c0_i32 = arith.constant 0 : i32
    %c0_i32_0 = arith.constant 0 : i32
    return %c0_i32, %arg0 : i32, i32
  }
  func.func @transform_1(%arg0: i32) -> (i32, i32) {
    %c0_i32 = arith.constant 0 : i32
    %c0_i32_0 = arith.constant 0 : i32
    return %c0_i32, %arg0 : i32, i32
  }
  func.func @transform_2(%arg0: i32) -> (i32, i32) {
    %c0_i32 = arith.constant 0 : i32
    %c0_i32_0 = arith.constant 0 : i32
    %c0_i32_1 = arith.constant 0 : i32
    return %c0_i32, %c0_i32_0 : i32, i32
  }
  func.func @transform_3(%arg0: i32) -> (i32, i32) {
    %c0_i32 = arith.constant 0 : i32
    %c0_i32_0 = arith.constant 0 : i32
    return %c0_i32, %arg0 : i32, i32
  }
}

</mosaic_0001>

<llo_original>
// kernel: tpu_custom_call.1
$region0: #{tpu_custom_call.1}
  #allocation0 [shape = 'u32[]', space=smem, size = 0x4, offset = 0x4, fixed_abs, tag = 'smem constant byte address 0x4 - core index']
  #allocation1 [shape = 'u32[72,128]{1,0:T(1,128)}', space=vmem, size = 0x9000, scoped, tag = 'internal scratch']
  %s0 = inlined_call_operand.vmem [shape: f32[2,128], index: 0, kind: input, shape index: {}]
  %s1 = inlined_call_operand.hbm [shape: f32[2,128], index: 1, kind: input, shape index: {}]
  %s2 = inlined_call_operand.vmem [shape: f32[2,1], index: 2, kind: input, shape index: {}]
  %s3 = inlined_call_operand.hbm [shape: f32[1,128], index: 3, kind: output, shape index: {}]
  %s4 = sld [smem:[#allocation0]]
  $region26: #{tpu_custom_call.1} parent=0
    _
  %s6 = ssub.s32 1, %s4
  %s7 = scalar_select 0, %s6, %s4
  $region1: #{tpu_custom_call.1} parent=0
    #allocation2 [shape = 'u8[1024]{0}', space=vmem, size = 0x400, scoped, tag = 'input window, operand 1, single buffered']
    #allocation3 [shape = 's32[1]{0}', space=sflag, size = 0x4, scoped, tag = 'scoped memory for tpu_custom_call.1']
    #allocation4 [shape = 's32[1]{0}', space=sflag, size = 0x4, scoped, tag = 'scoped memory for tpu_custom_call.1']
    #allocation5 [shape = 'u8[512]{0}', space=vmem, size = 0x400, scoped, tag = 'output window, operand 0, single buffered']
    %8 = vsyncpa [#allocation3], 0
    %9 = vsyncpa [#allocation4], 0
    // Predicated region
    $region2: #{tpu_custom_call.1} parent=1 // pred_check
      _
    $region3: #{tpu_custom_call.1} parent=1 // pred_check_branch
      %11 = sbr.rel (0) target = $region5
    $region4: #{tpu_custom_call.1} parent=1 // pred_region
      _
    $region5: #{tpu_custom_call.1} parent=1 // pred_fallthru
      _
    // Predicated region
    $region6: #{tpu_custom_call.1} parent=1 // pred_check
      _
    $region7: #{tpu_custom_call.1} parent=1 // pred_check_branch
      %13 = sbr.rel (0) target = $region9
    $region8: #{tpu_custom_call.1} parent=1 // pred_region
      %15 = vsyncadd [#allocation3], 0
      %s17 = sshll.u32 %s1, 4
      %s18 = int_to_ptr.hbm [resolvable:$true] %s17
      %s19 = sshll.u32 [#allocation2], 4
      %s20 = int_to_ptr.vmem [resolvable:$true] %s19
      %22 = dma.hbm_to_vmem [thread:$0]  %s18, 32, %s20, [#allocation3]
    $region9: #{tpu_custom_call.1} parent=1 // pred_fallthru
      _
    // Predicated region
    $region10: #{tpu_custom_call.1} parent=1 // pred_check
      _
    $region11: #{tpu_custom_call.1} parent=1 // pred_check_branch
      %24 = sbr.rel (0) target = $region13
    $region12: #{tpu_custom_call.1} parent=1 // pred_region
      _
    $region13: #{tpu_custom_call.1} parent=1 // pred_fallthru
      _
    // Predicated region
    $region14: #{tpu_custom_call.1} parent=1 // pred_check
      _
    $region15: #{tpu_custom_call.1} parent=1 // pred_check_branch
      %26 = sbr.rel (0) target = $region17
    $region16: #{tpu_custom_call.1} parent=1 // pred_region
      %28 = dma.done [#allocation3], 32
    $region17: #{tpu_custom_call.1} parent=1 // pred_fallthru
      _
    %v29 = vld [vmem:[%s0] sm:$0x3]
    %v30 = vld [vmem:[#allocation2] sm:$0x3]
    %v31 = vld [vmem:[%s2] sm:$0x3]
    %vm32 = vcmask 1041408
    %v33 = vsel %vm32, %v29, -inf
    %v34 = vrot.slane %v33, 4
    %v35 = vmax.f32 %v33, %v34
    %v36 = vrot.slane %v35, 2
    %v37 = vmax.f32 %v35, %v36
    %v38 = vrot.slane %v37, 1
    %v39 = vmax.f32 %v37, %v38
    %v40 = vsub.f32 %v29, %v39
    %v41 = vmul.f32 %v40, 1.442695
    %v42 = vpow.pop %v41
    %v43 = vsel %vm32, %v42, 0.0
    %v44 = vrot.slane %v43, 4
    %v45 = vadd.f32 %v43, %v44
    %v46 = vrot.slane %v45, 2
    %v47 = vadd.f32 %v45, %v46
    %v48 = vrot.slane %v47, 1
    %v49 = vadd.f32 %v47, %v48
    %v50 = vlog2.pop %v49
    %v51 = vmul.f32 %v50, 0.6931472
    %v52 = vadd.f32 %v51, %v39
    %v53 = vmul.f32 %v30, %v29
    %v54 = vsel %vm32, %v53, 0.0
    %v55 = vrot.slane %v54, 4
    %v56 = vadd.f32 %v54, %v55
    %v57 = vrot.slane %v56, 2
    %v58 = vadd.f32 %v56, %v57
    %v59 = vrot.slane %v58, 1
    %v60 = vadd.f32 %v58, %v59
    %62 = vset.pattern.permute.xlu0 0
    %63 = vperm.xlu0 %62, %v31
    %v64 = vpop.permute.xlu0 %63
    %v66 = vmul.f32 %v30, %v64
    %v67 = vsel %vm32, %v66, 0.0
    %v68 = vrot.slane %v67, 4
    %v69 = vadd.f32 %v67, %v68
    %v70 = vrot.slane %v69, 2
    %v71 = vadd.f32 %v69, %v70
    %v72 = vrot.slane %v71, 1
    %v73 = vadd.f32 %v71, %v72
    %v74 = vsub.f32 %v52, %v60
    %v75 = vmul.f32 %v74, %v73
    %76 = vst [vmem:[#allocation5] sm:$0x1] %v75
    // Predicated region
    $region18: #{tpu_custom_call.1} parent=1 // pred_check
      _
    $region19: #{tpu_custom_call.1} parent=1 // pred_check_branch
      %78 = sbr.rel (0) target = $region21
    $region20: #{tpu_custom_call.1} parent=1 // pred_region
      %80 = vsyncadd [#allocation4], 0
      %s82 = sshll.u32 [#allocation5], 4
      %s83 = int_to_ptr.vmem [resolvable:$true] %s82
      %s84 = sshll.u32 %s3, 4
      %s85 = int_to_ptr.hbm [resolvable:$true] %s84
      %87 = dma.vmem_to_hbm [thread:$0]  %s83, 16, %s85, [#allocation4]
    $region21: #{tpu_custom_call.1} parent=1 // pred_fallthru
      _
    // Predicated region
    $region22: #{tpu_custom_call.1} parent=1 // pred_check
      _
    $region23: #{tpu_custom_call.1} parent=1 // pred_check_branch
      %89 = sbr.rel (0) target = $region25
    $region24: #{tpu_custom_call.1} parent=1 // pred_region
      %91 = dma.done [#allocation4], 16
    $region25: #{tpu_custom_call.1} parent=1 // pred_fallthru
      _
    %92 = vsyncpa [#allocation3], 1
    %93 = vsyncpa [#allocation4], 1

</llo_original>
